<compile_context>
chip_gen: v7x
topology: tpu7x:2x2x1
jax: 0.10.0
libtpu: 0.0.40
codegen_flags: <defaults>
</compile_context>

<pallas_src>
import functools

import jax
import jax.numpy as jnp
from jax.experimental import pallas as pl
from jax.experimental.pallas import tpu as pltpu

FEAT = 1000            # efficientnet_b0 classifier width
FEAT_PAD = 1024        # lane-padded feature width (multiple of 128)
NUM_CLASSES = 18
OUT_PAD = 128          # lane-padded fc output width
DROPOUT_NUM = 4
DROPOUT_P = 0.5
KEEP_P = 1.0 - DROPOUT_P
MAX_HW_BLK = 1024      # max spatial-reduction tile (multiple of 128)


def _round_up(x, m):
    return ((x + m - 1) // m) * m


# ---------------------------------------------------------------------------
# Fused kernel: streamed GAP  ->  Linear(C, FEAT)  ->  averaged-dropout  ->  fc
# ---------------------------------------------------------------------------
def _fused_kernel(x_ref, wb_ref, bb_ref, mask_ref, wfc_ref, bfc_ref,
                  out_ref, pool_acc, *, inv_hw, n_lane_chunks):
    # x_ref:    [B_PAD, C, HW_BLK]    (one spatial block per grid step)
    # wb_ref:   [C, FEAT_PAD]         surrogate backbone projection
    # bb_ref:   [1, FEAT_PAD]
    # mask_ref: [B_PAD, FEAT_PAD]     averaged inverted-dropout mask
    # wfc_ref:  [FEAT_PAD, OUT_PAD]   fc weight (zero-padded rows/cols)
    # bfc_ref:  [1, OUT_PAD]
    # out_ref:  [B_PAD, OUT_PAD]
    # pool_acc: [B_PAD, C, 128]       VMEM scratch (lane-chunked spatial sums)
    step = pl.program_id(0)

    @pl.when(step == 0)
    def _init():
        pool_acc[...] = jnp.zeros_like(pool_acc)

    # Partial spatial sum for this H*W block: add aligned 128-lane chunks on
    # the VPU (no cross-lane traffic); the one XLU reduce happens at finalize.
    part = x_ref[:, :, 0:128]
    for j in range(1, n_lane_chunks):
        part = part + x_ref[:, :, j * 128:(j + 1) * 128]
    pool_acc[...] += part

    @pl.when(step == pl.num_programs(0) - 1)
    def _finalize():
        # Single cross-lane reduce + GAP scale (sum * 1/HW).
        pooled = jnp.sum(pool_acc[...], axis=-1) * inv_hw        # [B_PAD, C]
        feat = jnp.dot(pooled, wb_ref[...],
                       preferred_element_type=jnp.float32) + bb_ref[...]
        # Multi-sample dropout folded into one averaged mask (exact refactor):
        #   mean_i[(m_i/keep * feat) @ W + b] == ((mean_i m_i)/keep * feat) @ W + b
        dropped = feat * mask_ref[...]
        out_ref[...] = (jnp.dot(dropped, wfc_ref[...],
                                preferred_element_type=jnp.float32)
                        + bfc_ref[...])


# ---------------------------------------------------------------------------
# Wrapper
# ---------------------------------------------------------------------------
def multisample_forward(x_nchw, params, key, num_classes=NUM_CLASSES):
    """params are pre-padded once in make_params (no per-call weight padding)."""
    wb_pad, bb_pad, wfc_pad, bfc_pad = params
    b, c, h, w = x_nchw.shape
    hw = h * w

    b_pad = _round_up(b, 8)                       # sublane-aligned batch
    hw_pad128 = _round_up(hw, 128)                # lane-aligned spatial extent
    if hw_pad128 <= MAX_HW_BLK:
        hw_blk = hw_pad128                        # single grid step
        hw_pad = hw_pad128
    else:
        hw_blk = MAX_HW_BLK
        hw_pad = _round_up(hw, MAX_HW_BLK)
    n_blk = hw_pad // hw_blk
    n_lane_chunks = hw_blk // 128

    x3 = x_nchw.reshape(b, c, hw).astype(jnp.float32)
    # Zero-pad batch to sublanes and H*W to the block size (zeros do not
    # change the spatial sum; the mean uses the true 1/HW).
    if (b_pad != b) or (hw_pad != hw):
        x3 = jnp.pad(x3, ((0, b_pad - b), (0, 0), (0, hw_pad - hw)))

    # Training-mode multi-sample dropout: DROPOUT_NUM independent inverted
    # dropout masks, averaged into a single per-element scale.
    keep = jax.random.bernoulli(
        key, KEEP_P, (DROPOUT_NUM, b_pad, FEAT_PAD)).astype(jnp.float32)
    drop_mask = keep.sum(axis=0) * (1.0 / (DROPOUT_NUM * KEEP_P))

    kernel = functools.partial(_fused_kernel, inv_hw=1.0 / hw,
                               n_lane_chunks=n_lane_chunks)

    def full(shp):
        return pl.BlockSpec(shp, lambda i: (0,) * len(shp))

    out_pad = pl.pallas_call(
        kernel,
        grid=(n_blk,),
        in_specs=[
            pl.BlockSpec((b_pad, c, hw_blk), lambda i: (0, 0, i)),  # stream H*W
            full((c, FEAT_PAD)),
            full((1, FEAT_PAD)),
            full((b_pad, FEAT_PAD)),
            full((FEAT_PAD, OUT_PAD)),
            full((1, OUT_PAD)),
        ],
        out_specs=pl.BlockSpec((b_pad, OUT_PAD), lambda i: (0, 0)),
        out_shape=jax.ShapeDtypeStruct((b_pad, OUT_PAD), jnp.float32),
        scratch_shapes=[pltpu.VMEM((b_pad, c, 128), jnp.float32)],
        compiler_params=pltpu.CompilerParams(
            dimension_semantics=("arbitrary",)),
    )(x3, wb_pad, bb_pad, drop_mask, wfc_pad, bfc_pad)

    return out_pad[:b, :num_classes]


# ---------------------------------------------------------------------------
# Deterministic parameter construction (mirrors nn.init in __init__).
# Padding to TPU-friendly lane widths happens ONCE here.
# ---------------------------------------------------------------------------
def make_params(key, in_channels, num_classes=NUM_CLASSES):
    k0, k1 = jax.random.split(key)
    # Surrogate backbone projection (GAP -> Linear(C, FEAT)).
    wb = jax.random.normal(k0, (in_channels, FEAT), jnp.float32) / jnp.sqrt(in_channels)
    bb = jnp.zeros((FEAT,), jnp.float32)
    # fc head: weight ~ N(0, 0.001), bias = 0 (as in the PyTorch module).
    wfc = 0.001 * jax.random.normal(k1, (FEAT, num_classes), jnp.float32)
    bfc = jnp.zeros((num_classes,), jnp.float32)

    wb_pad = jnp.pad(wb, ((0, 0), (0, FEAT_PAD - FEAT)))
    bb_pad = jnp.pad(bb, (0, FEAT_PAD - FEAT)).reshape(1, FEAT_PAD)
    wfc_pad = jnp.pad(wfc, ((0, FEAT_PAD - FEAT), (0, OUT_PAD - num_classes)))
    bfc_pad = jnp.pad(bfc, (0, OUT_PAD - num_classes)).reshape(1, OUT_PAD)
    return wb_pad, bb_pad, wfc_pad, bfc_pad


if __name__ == "__main__":
    key = jax.random.PRNGKey(0)
    kx, kp, kd = jax.random.split(key, 3)

    B, C, H, W = 2, 4, 16, 16
    x = jax.random.normal(kx, (B, C, H, W), jnp.float32)   # NCHW, like PyTorch

    params = make_params(kp, C, NUM_CLASSES)

    out = multisample_forward(x, params, kd, NUM_CLASSES)
    jax.block_until_ready(out)

    assert out.shape == (B, NUM_CLASSES)
    assert bool(jnp.all(jnp.isfinite(out)))
    print("KERNEL_OK")
</pallas_src>

<mosaic_0001>
module attributes {stable_mosaic.version = 11 : i64} {
  func.func @_fused_kernel(%arg0: i32, %arg1: memref<8x4x256xf32, #tpu.memory_space<vmem>>, %arg2: memref<4x1024xf32, #tpu.memory_space<vmem>>, %arg3: memref<1x1024xf32, #tpu.memory_space<vmem>>, %arg4: memref<8x1024xf32, #tpu.memory_space<vmem>>, %arg5: memref<1024x128xf32, #tpu.memory_space<vmem>>, %arg6: memref<1x128xf32, #tpu.memory_space<vmem>>, %arg7: memref<8x128xf32, #tpu.memory_space<vmem>>, %arg8: memref<8x4x128xf32, #tpu.memory_space<vmem>>) attributes {dimension_semantics = [#tpu.dimension_semantics<arbitrary>], iteration_bounds = array<i64: 1>, scalar_prefetch = 0 : i64, scratch_operands = 1 : i64, tpu.core_type = #tpu.core_type<tc>, window_params = [{transform_indices = @transform_0, window_bounds = array<i64: 8, 4, 256>}, {pipeline_mode = #tpu.pipeline_mode<synchronous>, transform_indices = @transform_1, window_bounds = array<i64: 4, 1024>}, {pipeline_mode = #tpu.pipeline_mode<synchronous>, transform_indices = @transform_2, window_bounds = array<i64: 1, 1024>}, {pipeline_mode = #tpu.pipeline_mode<synchronous>, transform_indices = @transform_3, window_bounds = array<i64: 8, 1024>}, {pipeline_mode = #tpu.pipeline_mode<synchronous>, transform_indices = @transform_4, window_bounds = array<i64: 1024, 128>}, {pipeline_mode = #tpu.pipeline_mode<synchronous>, transform_indices = @transform_5, window_bounds = array<i64: 1, 128>}, {pipeline_mode = #tpu.pipeline_mode<synchronous>, transform_indices = @transform_6, window_bounds = array<i64: 8, 128>}]} {
    %c0_i32 = arith.constant 0 : i32
    %0 = arith.cmpi eq, %arg0, %c0_i32 : i32
    %1 = arith.extui %0 : i1 to i32
    %c0_i32_0 = arith.constant 0 : i32
    %2 = arith.cmpi ne, %1, %c0_i32_0 : i32
    scf.if %2 {
      %cst = arith.constant 0.000000e+00 : f32
      %12 = vector.broadcast %cst : f32 to vector<8x4x128xf32>
      %c0_13 = arith.constant 0 : index
      %c0_14 = arith.constant 0 : index
      %c0_15 = arith.constant 0 : index
      %13 = vector.load %arg8[%c0_13, %c0_14, %c0_15] : memref<8x4x128xf32, #tpu.memory_space<vmem>>, vector<8x4x128xf32>
      tpu.vector_store %arg8[%c0_13, %c0_14, %c0_15], %12 {strides = array<i32>} : memref<8x4x128xf32, #tpu.memory_space<vmem>>, vector<8x4x128xf32>,
    } else {
    }
    %c0 = arith.constant 0 : index
    %c0_1 = arith.constant 0 : index
    %c0_2 = arith.constant 0 : index
    %3 = vector.load %arg1[%c0, %c0_1, %c0_2] : memref<8x4x256xf32, #tpu.memory_space<vmem>>, vector<8x4x128xf32>
    %c0_3 = arith.constant 0 : index
    %c0_4 = arith.constant 0 : index
    %c128 = arith.constant 128 : index
    %4 = vector.load %arg1[%c0_3, %c0_4, %c128] : memref<8x4x256xf32, #tpu.memory_space<vmem>>, vector<8x4x128xf32>
    %5 = arith.addf %3, %4 : vector<8x4x128xf32>
    %c0_5 = arith.constant 0 : index
    %c0_6 = arith.constant 0 : index
    %c0_7 = arith.constant 0 : index
    %6 = vector.load %arg8[%c0_5, %c0_6, %c0_7] : memref<8x4x128xf32, #tpu.memory_space<vmem>>, vector<8x4x128xf32>
    %7 = arith.addf %6, %5 : vector<8x4x128xf32>
    %c0_8 = arith.constant 0 : index
    %c0_9 = arith.constant 0 : index
    %c0_10 = arith.constant 0 : index
    %8 = vector.load %arg8[%c0_8, %c0_9, %c0_10] : memref<8x4x128xf32, #tpu.memory_space<vmem>>, vector<8x4x128xf32>
    tpu.vector_store %arg8[%c0_8, %c0_9, %c0_10], %7 {strides = array<i32>} : memref<8x4x128xf32, #tpu.memory_space<vmem>>, vector<8x4x128xf32>,
    %c0_i32_11 = arith.constant 0 : i32
    %9 = arith.cmpi eq, %arg0, %c0_i32_11 : i32
    %10 = arith.extui %9 : i1 to i32
    %c0_i32_12 = arith.constant 0 : i32
    %11 = arith.cmpi ne, %10, %c0_i32_12 : i32
    scf.if %11 {
      %c0_13 = arith.constant 0 : index
      %c0_14 = arith.constant 0 : index
      %c0_15 = arith.constant 0 : index
      %12 = vector.load %arg8[%c0_13, %c0_14, %c0_15] : memref<8x4x128xf32, #tpu.memory_space<vmem>>, vector<8x4x128xf32>
      %cst = arith.constant dense<0.000000e+00> : vector<8x4xf32>
      %13 = vector.multi_reduction <add>, %12, %cst [2] : vector<8x4x128xf32> to vector<8x4xf32>
      %cst_16 = arith.constant 3.906250e-03 : f32
      %14 = vector.broadcast %cst_16 : f32 to vector<8x4xf32>
      %15 = arith.mulf %13, %14 : vector<8x4xf32>
      %c0_17 = arith.constant 0 : index
      %c0_18 = arith.constant 0 : index
      %16 = vector.load %arg2[%c0_17, %c0_18] : memref<4x1024xf32, #tpu.memory_space<vmem>>, vector<4x1024xf32>
      %cst_19 = arith.constant dense<0.000000e+00> : vector<8x1024xf32>
      %17 = tpu.matmul %15, %16, %cst_19 {dimension_numbers = #tpu.dot_dimension_numbers<[1], [0], [0], [1], [0, 0, 1, 1], [], []>} : vector<8x4xf32>, vector<4x1024xf32>, vector<8x1024xf32> -> vector<8x1024xf32>
      %c0_20 = arith.constant 0 : index
      %c0_21 = arith.constant 0 : index
      %18 = vector.load %arg3[%c0_20, %c0_21] : memref<1x1024xf32, #tpu.memory_space<vmem>>, vector<1x1024xf32>
      %19 = vector.broadcast %18 : vector<1x1024xf32> to vector<8x1024xf32>
      %20 = arith.addf %17, %19 : vector<8x1024xf32>
      %c0_22 = arith.constant 0 : index
      %c0_23 = arith.constant 0 : index
      %21 = vector.load %arg4[%c0_22, %c0_23] : memref<8x1024xf32, #tpu.memory_space<vmem>>, vector<8x1024xf32>
      %22 = arith.mulf %20, %21 : vector<8x1024xf32>
      %c0_24 = arith.constant 0 : index
      %c0_25 = arith.constant 0 : index
      %23 = vector.load %arg5[%c0_24, %c0_25] : memref<1024x128xf32, #tpu.memory_space<vmem>>, vector<1024x128xf32>
      %cst_26 = arith.constant dense<0.000000e+00> : vector<8x128xf32>
      %24 = tpu.matmul %22, %23, %cst_26 {dimension_numbers = #tpu.dot_dimension_numbers<[1], [0], [0], [1], [0, 0, 1, 1], [], []>} : vector<8x1024xf32>, vector<1024x128xf32>, vector<8x128xf32> -> vector<8x128xf32>
      %c0_27 = arith.constant 0 : index
      %c0_28 = arith.constant 0 : index
      %25 = vector.load %arg6[%c0_27, %c0_28] : memref<1x128xf32, #tpu.memory_space<vmem>>, vector<1x128xf32>
      %26 = vector.broadcast %25 : vector<1x128xf32> to vector<8x128xf32>
      %27 = arith.addf %24, %26 : vector<8x128xf32>
      %c0_29 = arith.constant 0 : index
      %c0_30 = arith.constant 0 : index
      %28 = vector.load %arg7[%c0_29, %c0_30] : memref<8x128xf32, #tpu.memory_space<vmem>>, vector<8x128xf32>
      tpu.vector_store %arg7[%c0_29, %c0_30], %27 {strides = array<i32>} : memref<8x128xf32, #tpu.memory_space<vmem>>, vector<8x128xf32>,
    } else {
    }
    return
  }
  func.func @transform_0(%arg0: i32) -> (i32, i32, i32) {
    %c0_i32 = arith.constant 0 : i32
    %c0_i32_0 = arith.constant 0 : i32
    %c0_i32_1 = arith.constant 0 : i32
    return %c0_i32, %c0_i32_0, %arg0 : i32, i32, i32
  }
  func.func @transform_1(%arg0: i32) -> (i32, i32) {
    %c0_i32 = arith.constant 0 : i32
    %c0_i32_0 = arith.constant 0 : i32
    %c0_i32_1 = arith.constant 0 : i32
    return %c0_i32, %c0_i32_0 : i32, i32
  }
  func.func @transform_2(%arg0: i32) -> (i32, i32) {
    %c0_i32 = arith.constant 0 : i32
    %c0_i32_0 = arith.constant 0 : i32
    %c0_i32_1 = arith.constant 0 : i32
    return %c0_i32, %c0_i32_0 : i32, i32
  }
  func.func @transform_3(%arg0: i32) -> (i32, i32) {
    %c0_i32 = arith.constant 0 : i32
    %c0_i32_0 = arith.constant 0 : i32
    %c0_i32_1 = arith.constant 0 : i32
    return %c0_i32, %c0_i32_0 : i32, i32
  }
  func.func @transform_4(%arg0: i32) -> (i32, i32) {
    %c0_i32 = arith.constant 0 : i32
    %c0_i32_0 = arith.constant 0 : i32
    %c0_i32_1 = arith.constant 0 : i32
    return %c0_i32, %c0_i32_0 : i32, i32
  }
  func.func @transform_5(%arg0: i32) -> (i32, i32) {
    %c0_i32 = arith.constant 0 : i32
    %c0_i32_0 = arith.constant 0 : i32
    %c0_i32_1 = arith.constant 0 : i32
    return %c0_i32, %c0_i32_0 : i32, i32
  }
  func.func @transform_6(%arg0: i32) -> (i32, i32) {
    %c0_i32 = arith.constant 0 : i32
    %c0_i32_0 = arith.constant 0 : i32
    %c0_i32_1 = arith.constant 0 : i32
    return %c0_i32, %c0_i32_0 : i32, i32
  }
}

</mosaic_0001>

<llo_original>
// kernel: tpu_custom_call.1
$region0: #{tpu_custom_call.1}
  #allocation0 [shape = 'u32[]', space=smem, size = 0x4, offset = 0x4, fixed_abs, tag = 'smem constant byte address 0x4 - core index']
  #allocation1 [shape = 'u32[144,128]{1,0:T(1,128)}', space=vmem, size = 0x12000, scoped, tag = 'internal scratch']
  #allocation2 [shape = 'f32[8,4,128]{2,1,0:T(4,128)}', space=vmem, size = 0x4000, scoped, tag = 'scratch operand']
  %s0 = inlined_call_operand.hbm [shape: f32[8,4,256], index: 0, kind: input, shape index: {}]
  %s1 = inlined_call_operand.hbm [shape: f32[4,1024], index: 1, kind: input, shape index: {}]
  %s2 = inlined_call_operand.hbm [shape: f32[1,1024], index: 2, kind: input, shape index: {}]
  %s3 = inlined_call_operand.hbm [shape: f32[8,1024], index: 3, kind: input, shape index: {}]
  %s4 = inlined_call_operand.hbm [shape: f32[1024,128], index: 4, kind: input, shape index: {}]
  %s5 = inlined_call_operand.vmem [shape: f32[1,128], index: 5, kind: input, shape index: {}]
  %s6 = inlined_call_operand.hbm [shape: f32[8,128], index: 6, kind: output, shape index: {}]
  %s7 = sld [smem:[#allocation0]]
  $region62: #{tpu_custom_call.1} parent=0
    _
  %s9 = ssub.s32 1, %s7
  %s10 = scalar_select 0, %s9, %s7
  $region1: #{tpu_custom_call.1} parent=0
    #allocation3 [shape = 'u8[32768]{0}', space=vmem, size = 0x8000, scoped, tag = 'input window, operand 0, single buffered']
    #allocation4 [shape = 's32[1]{0}', space=sflag, size = 0x4, scoped, tag = 'scoped memory for tpu_custom_call.1']
    #allocation5 [shape = 's32[1]{0}', space=sflag, size = 0x4, scoped, tag = 'scoped memory for tpu_custom_call.1']
    #allocation6 [shape = 'u8[16384]{0}', space=vmem, size = 0x4000, scoped, tag = 'input window, operand 1, single buffered']
    #allocation7 [shape = 's32[1]{0}', space=sflag, size = 0x4, scoped, tag = 'scoped memory for tpu_custom_call.1']
    #allocation8 [shape = 'u8[4096]{0}', space=vmem, size = 0x1000, scoped, tag = 'input window, operand 2, single buffered']
    #allocation9 [shape = 'u8[32768]{0}', space=vmem, size = 0x8000, scoped, tag = 'input window, operand 3, single buffered']
    #allocation10 [shape = 's32[1]{0}', space=sflag, size = 0x4, scoped, tag = 'scoped memory for tpu_custom_call.1']
    #allocation11 [shape = 'u8[524288]{0}', space=vmem, size = 0x80000, scoped, tag = 'input window, operand 4, single buffered']
    #allocation12 [shape = 'u8[4096]{0}', space=vmem, size = 0x1000, scoped, tag = 'output window, operand 0, single buffered']
    %11 = vsyncpa [#allocation4], 0
    %12 = vsyncpa [#allocation7], 0
    %13 = vsyncpa [#allocation10], 0
    %14 = vsyncpa [#allocation5], 0
    // Predicated region
    $region2: #{tpu_custom_call.1} parent=1 // pred_check
      _
    $region3: #{tpu_custom_call.1} parent=1 // pred_check_branch
      %16 = sbr.rel (0) target = $region5
    $region4: #{tpu_custom_call.1} parent=1 // pred_region
      %s18 = ssub.s32 1024, 1024
      %19 = vsyncadd [#allocation4], %s18
      %s20 = sshll.u32 [#allocation3], 4
      %s21 = int_to_ptr.vmem [resolvable:$true] %s20
      %26 = dma.hbm_to_vmem [thread:$0]  %s0, 1024, %s21, [#allocation4], 128, 128, 8
    $region5: #{tpu_custom_call.1} parent=1 // pred_fallthru
      _
    // Predicated region
    $region6: #{tpu_custom_call.1} parent=1 // pred_check
      _
    $region7: #{tpu_custom_call.1} parent=1 // pred_check_branch
      %28 = sbr.rel (0) target = $region9
    $region8: #{tpu_custom_call.1} parent=1 // pred_region
      %s30 = ssub.s32 512, 512
      %31 = vsyncadd [#allocation7], %s30
      %s33 = sshll.u32 [#allocation6], 4
      %s34 = int_to_ptr.vmem [resolvable:$true] %s33
      %36 = dma.hbm_to_vmem [thread:$0]  %s1, 512, %s34, [#allocation7]
    $region9: #{tpu_custom_call.1} parent=1 // pred_fallthru
      _
    // Predicated region
    $region10: #{tpu_custom_call.1} parent=1 // pred_check
      _
    $region11: #{tpu_custom_call.1} parent=1 // pred_check_branch
      %38 = sbr.rel (0) target = $region13
    $region12: #{tpu_custom_call.1} parent=1 // pred_region
      %s40 = ssub.s32 128, 128
      %41 = vsyncadd [#allocation7], %s40
      %s43 = sshll.u32 [#allocation8], 4
      %s44 = int_to_ptr.vmem [resolvable:$true] %s43
      %46 = dma.hbm_to_vmem [thread:$0]  %s2, 128, %s44, [#allocation7]
    $region13: #{tpu_custom_call.1} parent=1 // pred_fallthru
      _
    // Predicated region
    $region14: #{tpu_custom_call.1} parent=1 // pred_check
      _
    $region15: #{tpu_custom_call.1} parent=1 // pred_check_branch
      %48 = sbr.rel (0) target = $region17
    $region16: #{tpu_custom_call.1} parent=1 // pred_region
      %s50 = ssub.s32 1024, 1024
      %51 = vsyncadd [#allocation10], %s50
      %s53 = sshll.u32 [#allocation9], 4
      %s54 = int_to_ptr.vmem [resolvable:$true] %s53
      %56 = dma.hbm_to_vmem [thread:$0]  %s3, 1024, %s54, [#allocation10]
    $region17: #{tpu_custom_call.1} parent=1 // pred_fallthru
      _
    // Predicated region
    $region18: #{tpu_custom_call.1} parent=1 // pred_check
      _
    $region19: #{tpu_custom_call.1} parent=1 // pred_check_branch
      %58 = sbr.rel (0) target = $region21
    $region20: #{tpu_custom_call.1} parent=1 // pred_region
      %s60 = ssub.s32 16384, 16384
      %61 = vsyncadd [#allocation10], %s60
      %s62 = sshll.u32 [#allocation11], 4
      %s63 = int_to_ptr.vmem [resolvable:$true] %s62
      %68 = dma.hbm_to_vmem [thread:$0]  %s4, 16384, %s63, [#allocation10], 128, 128, 8
    $region21: #{tpu_custom_call.1} parent=1 // pred_fallthru
      _
    // Predicated region
    $region22: #{tpu_custom_call.1} parent=1 // pred_check
      _
    $region23: #{tpu_custom_call.1} parent=1 // pred_check_branch
      %70 = sbr.rel (0) target = $region25
    $region24: #{tpu_custom_call.1} parent=1 // pred_region
      _
    $region25: #{tpu_custom_call.1} parent=1 // pred_fallthru
      _
    // Predicated region
    $region26: #{tpu_custom_call.1} parent=1 // pred_check
      _
    $region27: #{tpu_custom_call.1} parent=1 // pred_check_branch
      %72 = sbr.rel (0) target = $region29
    $region28: #{tpu_custom_call.1} parent=1 // pred_region
      %73 = dma.done [#allocation4], 1024
    $region29: #{tpu_custom_call.1} parent=1 // pred_fallthru
      _
    // Predicated region
    $region30: #{tpu_custom_call.1} parent=1 // pred_check
      _
    $region31: #{tpu_custom_call.1} parent=1 // pred_check_branch
      %75 = sbr.rel (0) target = $region33
    $region32: #{tpu_custom_call.1} parent=1 // pred_region
      %76 = dma.done [#allocation7], 512
    $region33: #{tpu_custom_call.1} parent=1 // pred_fallthru
      _
    // Predicated region
    $region34: #{tpu_custom_call.1} parent=1 // pred_check
      _
    $region35: #{tpu_custom_call.1} parent=1 // pred_check_branch
      %78 = sbr.rel (0) target = $region37
    $region36: #{tpu_custom_call.1} parent=1 // pred_region
      %79 = dma.done [#allocation7], 128
    $region37: #{tpu_custom_call.1} parent=1 // pred_fallthru
      _
    // Predicated region
    $region38: #{tpu_custom_call.1} parent=1 // pred_check
      _
    $region39: #{tpu_custom_call.1} parent=1 // pred_check_branch
      %81 = sbr.rel (0) target = $region41
    $region40: #{tpu_custom_call.1} parent=1 // pred_region
      %82 = dma.done [#allocation10], 1024
    $region41: #{tpu_custom_call.1} parent=1 // pred_fallthru
      _
    // Predicated region
    $region42: #{tpu_custom_call.1} parent=1 // pred_check
      _
    $region43: #{tpu_custom_call.1} parent=1 // pred_check_branch
      %84 = sbr.rel (0) target = $region45
    $region44: #{tpu_custom_call.1} parent=1 // pred_region
      %85 = dma.done [#allocation10], 16384
    $region45: #{tpu_custom_call.1} parent=1 // pred_fallthru
      _
    %p86 = scmp.eq.s32.totalorder 0, 0
    // Predicated region
    $region46: #{tpu_custom_call.1} parent=1 // pred_check
      %p87 = pneg %p86
    $region47: #{tpu_custom_call.1} parent=1 // pred_check_branch
      %89 = sbr.rel (%p87) target = $region49
    $region48: #{tpu_custom_call.1} parent=1 // pred_region
      %90 = vst [vmem:[#allocation2] sm:$0xf] 0.0
      %91 = vst [vmem:[#allocation2 + $0x4] sm:$0xf] 0.0
      %92 = vst [vmem:[#allocation2 + $0x8] sm:$0xf] 0.0
      %93 = vst [vmem:[#allocation2 + $0xc] sm:$0xf] 0.0
      %94 = vst [vmem:[#allocation2 + $0x10] sm:$0xf] 0.0
      %95 = vst [vmem:[#allocation2 + $0x14] sm:$0xf] 0.0
      %96 = vst [vmem:[#allocation2 + $0x18] sm:$0xf] 0.0
      %97 = vst [vmem:[#allocation2 + $0x1c] sm:$0xf] 0.0
    $region49: #{tpu_custom_call.1} parent=1 // pred_fallthru
      _
    %v98 = vld [vmem:[#allocation3] sm:$0xf]
    %v99 = vld [vmem:[#allocation3 + $0x8] sm:$0xf]
    %v100 = vld [vmem:[#allocation3 + $0x10] sm:$0xf]
    %v101 = vld [vmem:[#allocation3 + $0x18] sm:$0xf]
    %v102 = vld [vmem:[#allocation3 + $0x20] sm:$0xf]
    %v103 = vld [vmem:[#allocation3 + $0x28] sm:$0xf]
    %v104 = vld [vmem:[#allocation3 + $0x30] sm:$0xf]
    %v105 = vld [vmem:[#allocation3 + $0x38] sm:$0xf]
    %v106 = vld [vmem:[#allocation3 + $0x4] sm:$0xf]
    %v107 = vld [vmem:[#allocation3 + $0xc] sm:$0xf]
    %v108 = vld [vmem:[#allocation3 + $0x14] sm:$0xf]
    %v109 = vld [vmem:[#allocation3 + $0x1c] sm:$0xf]
    %v110 = vld [vmem:[#allocation3 + $0x24] sm:$0xf]
    %v111 = vld [vmem:[#allocation3 + $0x2c] sm:$0xf]
    %v112 = vld [vmem:[#allocation3 + $0x34] sm:$0xf]
    %v113 = vld [vmem:[#allocation3 + $0x3c] sm:$0xf]
    %v114 = vadd.f32 %v98, %v106
    %v115 = vadd.f32 %v99, %v107
    %v116 = vadd.f32 %v100, %v108
    %v117 = vadd.f32 %v101, %v109
    %v118 = vadd.f32 %v102, %v110
    %v119 = vadd.f32 %v103, %v111
    %v120 = vadd.f32 %v104, %v112
    %v121 = vadd.f32 %v105, %v113
    %v122 = vld [vmem:[#allocation2] sm:$0xf]
    %v123 = vld [vmem:[#allocation2 + $0x4] sm:$0xf]
    %v124 = vld [vmem:[#allocation2 + $0x8] sm:$0xf]
    %v125 = vld [vmem:[#allocation2 + $0xc] sm:$0xf]
    %v126 = vld [vmem:[#allocation2 + $0x10] sm:$0xf]
    %v127 = vld [vmem:[#allocation2 + $0x14] sm:$0xf]
    %v128 = vld [vmem:[#allocation2 + $0x18] sm:$0xf]
    %v129 = vld [vmem:[#allocation2 + $0x1c] sm:$0xf]
    %v130 = vadd.f32 %v122, %v114
    %v131 = vadd.f32 %v123, %v115
    %v132 = vadd.f32 %v124, %v116
    %v133 = vadd.f32 %v125, %v117
    %v134 = vadd.f32 %v126, %v118
    %v135 = vadd.f32 %v127, %v119
    %v136 = vadd.f32 %v128, %v120
    %v137 = vadd.f32 %v129, %v121
    %138 = vst [vmem:[#allocation2] sm:$0xf] %v130
    %139 = vst [vmem:[#allocation2 + $0x4] sm:$0xf] %v131
    %140 = vst [vmem:[#allocation2 + $0x8] sm:$0xf] %v132
    %141 = vst [vmem:[#allocation2 + $0xc] sm:$0xf] %v133
    %142 = vst [vmem:[#allocation2 + $0x10] sm:$0xf] %v134
    %143 = vst [vmem:[#allocation2 + $0x14] sm:$0xf] %v135
    %144 = vst [vmem:[#allocation2 + $0x18] sm:$0xf] %v136
    %145 = vst [vmem:[#allocation2 + $0x1c] sm:$0xf] %v137
    // Predicated region
    $region50: #{tpu_custom_call.1} parent=1 // pred_check
      %p146 = pneg %p86
    $region51: #{tpu_custom_call.1} parent=1 // pred_check_branch
      %148 = sbr.rel (%p146) target = $region53
    $region52: #{tpu_custom_call.1} parent=1 // pred_region
      %v149 = vld [vmem:[#allocation2] sm:$0xf]
      %v150 = vld [vmem:[#allocation2 + $0x4] sm:$0xf]
      %v151 = vld [vmem:[#allocation2 + $0x8] sm:$0xf]
      %v152 = vld [vmem:[#allocation2 + $0xc] sm:$0xf]
      %v153 = vld [vmem:[#allocation2 + $0x10] sm:$0xf]
      %v154 = vld [vmem:[#allocation2 + $0x14] sm:$0xf]
      %v155 = vld [vmem:[#allocation2 + $0x18] sm:$0xf]
      %v156 = vld [vmem:[#allocation2 + $0x1c] sm:$0xf]
      %vm157 = vcmask 1043456
      %v158 = vsel %vm157, %v149, 0.0
      %159 = vadd.xlane.f32.xlu0 %v158
      %v160 = vpop.xlane.xlu0 %159
      %v161 = vsel %vm157, %v150, 0.0
      %162 = vadd.xlane.f32.xlu0 %v161
      %v163 = vpop.xlane.xlu0 %162
      %v164 = vsel %vm157, %v151, 0.0
      %165 = vadd.xlane.f32.xlu0 %v164
      %v166 = vpop.xlane.xlu0 %165
      %v167 = vsel %vm157, %v152, 0.0
      %168 = vadd.xlane.f32.xlu0 %v167
      %v169 = vpop.xlane.xlu0 %168
      %v170 = vsel %vm157, %v153, 0.0
      %171 = vadd.xlane.f32.xlu0 %v170
      %v172 = vpop.xlane.xlu0 %171
      %v173 = vsel %vm157, %v154, 0.0
      %174 = vadd.xlane.f32.xlu0 %v173
      %v175 = vpop.xlane.xlu0 %174
      %v176 = vsel %vm157, %v155, 0.0
      %177 = vadd.xlane.f32.xlu0 %v176
      %v178 = vpop.xlane.xlu0 %177
      %v179 = vsel %vm157, %v156, 0.0
      %180 = vadd.xlane.f32.xlu0 %v179
      %v181 = vpop.xlane.xlu0 %180
      %v182 = vmul.f32 %v160, 0.00390625
      %v183 = vmul.f32 %v163, 0.00390625
      %v184 = vmul.f32 %v166, 0.00390625
      %v185 = vmul.f32 %v169, 0.00390625
      %v186 = vmul.f32 %v172, 0.00390625
      %v187 = vmul.f32 %v175, 0.00390625
      %v188 = vmul.f32 %v178, 0.00390625
      %v189 = vmul.f32 %v181, 0.00390625
      %v190 = vld [vmem:[#allocation6] sm:$0xff]
      %v191 = vld [vmem:[#allocation6 + $0x8] sm:$0xff]
      %v192 = vld [vmem:[#allocation6 + $0x10] sm:$0xff]
      %v193 = vld [vmem:[#allocation6 + $0x18] sm:$0xff]
      %v194 = vld [vmem:[#allocation8] sm:$0xff]
      %v196 = vlaneseq
      %v197 = vshrl.u32 %v196, 7
      %v198 = vsub.s32 0, %v197
      %v199 = vrot.slane %v194, %v198
      %v200 = vlaneseq
      %v201 = vshrl.u32 %v200, 7
      %v202 = vsub.s32 1, %v201
      %v203 = vrot.slane %v194, %v202
      %v204 = vlaneseq
      %v205 = vshrl.u32 %v204, 7
      %v206 = vsub.s32 2, %v205
      %v207 = vrot.slane %v194, %v206
      %v208 = vlaneseq
      %v209 = vshrl.u32 %v208, 7
      %v210 = vsub.s32 3, %v209
      %v211 = vrot.slane %v194, %v210
      %v212 = vlaneseq
      %v213 = vshrl.u32 %v212, 7
      %v214 = vsub.s32 4, %v213
      %v215 = vrot.slane %v194, %v214
      %v216 = vlaneseq
      %v217 = vshrl.u32 %v216, 7
      %v218 = vsub.s32 5, %v217
      %v219 = vrot.slane %v194, %v218
      %v220 = vlaneseq
      %v221 = vshrl.u32 %v220, 7
      %v222 = vsub.s32 6, %v221
      %v223 = vrot.slane %v194, %v222
      %v224 = vlaneseq
      %v225 = vshrl.u32 %v224, 7
      %v226 = vsub.s32 7, %v225
      %v227 = vrot.slane %v194, %v226
      %v244 = vlaneseq
      %v245 = vand.u32 %v244, 127
      %v246 = vlaneseq
      %v247 = vshrl.u32 %v246, 7
      %v248 = vsub.s32 %v245, %v247
      %v249 = vrot.slane %v182, %v248
      %v250 = vlaneseq
      %v251 = vshrl.u32 %v250, 7
      %v252 = vsub.s32 %v245, %v251
      %v253 = vrot.slane %v183, %v252
      %v254 = vlaneseq
      %v255 = vshrl.u32 %v254, 7
      %v256 = vsub.s32 %v245, %v255
      %v257 = vrot.slane %v184, %v256
      %v258 = vlaneseq
      %v259 = vshrl.u32 %v258, 7
      %v260 = vsub.s32 %v245, %v259
      %v261 = vrot.slane %v185, %v260
      %v262 = vlaneseq
      %v263 = vshrl.u32 %v262, 7
      %v264 = vsub.s32 %v245, %v263
      %v265 = vrot.slane %v186, %v264
      %v266 = vlaneseq
      %v267 = vshrl.u32 %v266, 7
      %v268 = vsub.s32 %v245, %v267
      %v269 = vrot.slane %v187, %v268
      %v270 = vlaneseq
      %v271 = vshrl.u32 %v270, 7
      %v272 = vsub.s32 %v245, %v271
      %v273 = vrot.slane %v188, %v272
      %v274 = vlaneseq
      %v275 = vshrl.u32 %v274, 7
      %v276 = vsub.s32 %v245, %v275
      %v277 = vrot.slane %v189, %v276
      %vm278 = vcmask 1041409
      %v279 = vsel %vm278, %v253, %v249
      %vm280 = vcmask 1042434
      %v281 = vsel %vm280, %v257, %v279
      %vm282 = vcmask 1043459
      %v283 = vsel %vm282, %v261, %v281
      %vm284 = vcmask 1044484
      %v285 = vsel %vm284, %v265, %v283
      %vm286 = vcmask 1045509
      %v287 = vsel %vm286, %v269, %v285
      %vm288 = vcmask 1046534
      %v289 = vsel %vm288, %v273, %v287
      %vm290 = vcmask 1047559
      %v291 = vsel %vm290, %v277, %v289
      %v296 = vcombine.high %v190, %v190
      %v297 = vcombine.high %v191, %v191
      %v298 = vcombine.high %v192, %v192
      %v299 = vcombine.high %v193, %v193
      %vm300 = vcmask 31744
      %v301 = vsel %vm300, %v291, 0
      %v303 = vsel %vm157, %v190, 0
      %v305 = vsel %vm157, %v296, 0
      %v307 = vsel %vm157, %v191, 0
      %v309 = vsel %vm157, %v297, 0
      %v311 = vsel %vm157, %v192, 0
      %v313 = vsel %vm157, %v298, 0
      %v315 = vsel %vm157, %v193, 0
      %v317 = vsel %vm157, %v299, 0
      %319 = vmatprep.subr.mxu0 %v305
      %320 = vmatpush1.msra.mxu0 %v303
      %321 = vmatprep.subr.mxu0 0.0
      %322 = vmatpush1.msra.mxu0 0.0
      %323 = vmatprep.subr.mxu0 0.0
      %324 = vmatpush1.msra.mxu0 0.0
      %325 = vmatprep.subr.mxu0 0.0
      %326 = vmatpush1.msra.mxu0 0.0
      %327 = vmatprep.subr.mxu0 0.0
      %328 = vmatpush1.msra.mxu0 0.0
      %329 = vmatprep.subr.mxu0 0.0
      %330 = vmatpush1.msra.mxu0 0.0
      %331 = vmatprep.subr.mxu0 0.0
      %332 = vmatpush1.msra.mxu0 0.0
      %333 = vmatprep.subr.mxu0 0.0
      %334 = vmatpush1.msra.mxu0 0.0
      %335 = vmatprep.subr.mxu0 0.0
      %336 = vmatpush1.msra.mxu0 0.0
      %337 = vmatprep.subr.mxu0 0.0
      %338 = vmatpush1.msra.mxu0 0.0
      %339 = vmatprep.subr.mxu0 0.0
      %340 = vmatpush1.msra.mxu0 0.0
      %341 = vmatprep.subr.mxu0 0.0
      %342 = vmatpush1.msra.mxu0 0.0
      %343 = vmatprep.subr.mxu0 0.0
      %344 = vmatpush1.msra.mxu0 0.0
      %345 = vmatprep.subr.mxu0 0.0
      %346 = vmatpush1.msra.mxu0 0.0
      %347 = vmatprep.subr.mxu0 0.0
      %348 = vmatpush1.msra.mxu0 0.0
      %349 = vmatprep.subr.mxu0 0.0
      %350 = vmatpush1.msra.mxu0 0.0
      %351 = vmatprep.subr.mxu0 0.0
      %352 = vmatpush1.msra.mxu0 0.0
      %353 = vmatprep.subr.mxu0 0.0
      %354 = vmatpush1.msra.mxu0 0.0
      %355 = vmatprep.subr.mxu0 0.0
      %356 = vmatpush1.msra.mxu0 0.0
      %357 = vmatprep.subr.mxu0 0.0
      %358 = vmatpush1.msra.mxu0 0.0
      %359 = vmatprep.subr.mxu0 0.0
      %360 = vmatpush1.msra.mxu0 0.0
      %361 = vmatprep.subr.mxu0 0.0
      %362 = vmatpush1.msra.mxu0 0.0
      %363 = vmatprep.subr.mxu0 0.0
      %364 = vmatpush1.msra.mxu0 0.0
      %365 = vmatprep.subr.mxu0 0.0
      %366 = vmatpush1.msra.mxu0 0.0
      %367 = vmatprep.subr.mxu0 0.0
      %368 = vmatpush1.msra.mxu0 0.0
      %369 = vmatprep.subr.mxu0 0.0
      %370 = vmatpush1.msra.mxu0 0.0
      %371 = vmatprep.subr.mxu0 0.0
      %372 = vmatpush1.msra.mxu0 0.0
      %373 = vmatprep.subr.mxu0 0.0
      %374 = vmatpush1.msra.mxu0 0.0
      %375 = vmatprep.subr.mxu0 0.0
      %376 = vmatpush1.msra.mxu0 0.0
      %377 = vmatprep.subr.mxu0 0.0
      %378 = vmatpush1.msra.mxu0 0.0
      %379 = vmatprep.subr.mxu0 0.0
      %380 = vmatpush1.msra.mxu0 0.0
      %381 = vmatprep.subr.mxu0 0.0
      %382 = vmatpush1.msra.mxu0 0.0
      %383 = vmatprep.mubr.f32.mxu0 0.0
      %384 = vmatmul.mubr.f32.gmra.mrb[0].mxu0 %v301
      %v385 = vpop.f32.mrb[0].mxu0
      %v386 = vadd.f32 %v199, %v385
      %v387 = vpop.f32.mrb[0].mxu0
      %v388 = vadd.f32 %v203, %v387
      %389 = vdwg.mxu0
      %390 = vmatprep.subr.mxu0 %v309
      %391 = vmatpush1.msra.mxu0 %v307
      %392 = vmatprep.subr.mxu0 0.0
      %393 = vmatpush1.msra.mxu0 0.0
      %394 = vmatprep.subr.mxu0 0.0
      %395 = vmatpush1.msra.mxu0 0.0
      %396 = vmatprep.subr.mxu0 0.0
      %397 = vmatpush1.msra.mxu0 0.0
      %398 = vmatprep.subr.mxu0 0.0
      %399 = vmatpush1.msra.mxu0 0.0
      %400 = vmatprep.subr.mxu0 0.0
      %401 = vmatpush1.msra.mxu0 0.0
      %402 = vmatprep.subr.mxu0 0.0
      %403 = vmatpush1.msra.mxu0 0.0
      %404 = vmatprep.subr.mxu0 0.0
      %405 = vmatpush1.msra.mxu0 0.0
      %406 = vmatprep.subr.mxu0 0.0
      %407 = vmatpush1.msra.mxu0 0.0
      %408 = vmatprep.subr.mxu0 0.0
      %409 = vmatpush1.msra.mxu0 0.0
      %410 = vmatprep.subr.mxu0 0.0
      %411 = vmatpush1.msra.mxu0 0.0
      %412 = vmatprep.subr.mxu0 0.0
      %413 = vmatpush1.msra.mxu0 0.0
      %414 = vmatprep.subr.mxu0 0.0
      %415 = vmatpush1.msra.mxu0 0.0
      %416 = vmatprep.subr.mxu0 0.0
      %417 = vmatpush1.msra.mxu0 0.0
      %418 = vmatprep.subr.mxu0 0.0
      %419 = vmatpush1.msra.mxu0 0.0
      %420 = vmatprep.subr.mxu0 0.0
      %421 = vmatpush1.msra.mxu0 0.0
      %422 = vmatprep.subr.mxu0 0.0
      %423 = vmatpush1.msra.mxu0 0.0
      %424 = vmatprep.subr.mxu0 0.0
      %425 = vmatpush1.msra.mxu0 0.0
      %426 = vmatprep.subr.mxu0 0.0
      %427 = vmatpush1.msra.mxu0 0.0
      %428 = vmatprep.subr.mxu0 0.0
      %429 = vmatpush1.msra.mxu0 0.0
      %430 = vmatprep.subr.mxu0 0.0
      %431 = vmatpush1.msra.mxu0 0.0
      %432 = vmatprep.subr.mxu0 0.0
      %433 = vmatpush1.msra.mxu0 0.0
      %434 = vmatprep.subr.mxu0 0.0
      %435 = vmatpush1.msra.mxu0 0.0
      %436 = vmatprep.subr.mxu0 0.0
      %437 = vmatpush1.msra.mxu0 0.0
      %438 = vmatprep.subr.mxu0 0.0
      %439 = vmatpush1.msra.mxu0 0.0
      %440 = vmatprep.subr.mxu0 0.0
      %441 = vmatpush1.msra.mxu0 0.0
      %442 = vmatprep.subr.mxu0 0.0
      %443 = vmatpush1.msra.mxu0 0.0
      %444 = vmatprep.subr.mxu0 0.0
      %445 = vmatpush1.msra.mxu0 0.0
      %446 = vmatprep.subr.mxu0 0.0
      %447 = vmatpush1.msra.mxu0 0.0
      %448 = vmatprep.subr.mxu0 0.0
      %449 = vmatpush1.msra.mxu0 0.0
      %450 = vmatprep.subr.mxu0 0.0
      %451 = vmatpush1.msra.mxu0 0.0
      %452 = vmatprep.subr.mxu0 0.0
      %453 = vmatpush1.msra.mxu0 0.0
      %454 = vmatprep.mubr.f32.mxu0 0.0
      %455 = vmatmul.mubr.f32.gmra.mrb[0].mxu0 %v301
      %v456 = vpop.f32.mrb[0].mxu0
      %v457 = vadd.f32 %v207, %v456
      %v458 = vpop.f32.mrb[0].mxu0
      %v459 = vadd.f32 %v211, %v458
      %460 = vdwg.mxu0
      %461 = vmatprep.subr.mxu0 %v313
      %462 = vmatpush1.msra.mxu0 %v311
      %463 = vmatprep.subr.mxu0 0.0
      %464 = vmatpush1.msra.mxu0 0.0
      %465 = vmatprep.subr.mxu0 0.0
      %466 = vmatpush1.msra.mxu0 0.0
      %467 = vmatprep.subr.mxu0 0.0
      %468 = vmatpush1.msra.mxu0 0.0
      %469 = vmatprep.subr.mxu0 0.0
      %470 = vmatpush1.msra.mxu0 0.0
      %471 = vmatprep.subr.mxu0 0.0
      %472 = vmatpush1.msra.mxu0 0.0
      %473 = vmatprep.subr.mxu0 0.0
      %474 = vmatpush1.msra.mxu0 0.0
      %475 = vmatprep.subr.mxu0 0.0
      %476 = vmatpush1.msra.mxu0 0.0
      %477 = vmatprep.subr.mxu0 0.0
      %478 = vmatpush1.msra.mxu0 0.0
      %479 = vmatprep.subr.mxu0 0.0
      %480 = vmatpush1.msra.mxu0 0.0
      %481 = vmatprep.subr.mxu0 0.0
      %482 = vmatpush1.msra.mxu0 0.0
      %483 = vmatprep.subr.mxu0 0.0
      %484 = vmatpush1.msra.mxu0 0.0
      %485 = vmatprep.subr.mxu0 0.0
      %486 = vmatpush1.msra.mxu0 0.0
      %487 = vmatprep.subr.mxu0 0.0
      %488 = vmatpush1.msra.mxu0 0.0
      %489 = vmatprep.subr.mxu0 0.0
      %490 = vmatpush1.msra.mxu0 0.0
      %491 = vmatprep.subr.mxu0 0.0
      %492 = vmatpush1.msra.mxu0 0.0
      %493 = vmatprep.subr.mxu0 0.0
      %494 = vmatpush1.msra.mxu0 0.0
      %495 = vmatprep.subr.mxu0 0.0
      %496 = vmatpush1.msra.mxu0 0.0
      %497 = vmatprep.subr.mxu0 0.0
      %498 = vmatpush1.msra.mxu0 0.0
      %499 = vmatprep.subr.mxu0 0.0
      %500 = vmatpush1.msra.mxu0 0.0
      %501 = vmatprep.subr.mxu0 0.0
      %502 = vmatpush1.msra.mxu0 0.0
      %503 = vmatprep.subr.mxu0 0.0
      %504 = vmatpush1.msra.mxu0 0.0
      %505 = vmatprep.subr.mxu0 0.0
      %506 = vmatpush1.msra.mxu0 0.0
      %507 = vmatprep.subr.mxu0 0.0
      %508 = vmatpush1.msra.mxu0 0.0
      %509 = vmatprep.subr.mxu0 0.0
      %510 = vmatpush1.msra.mxu0 0.0
      %511 = vmatprep.subr.mxu0 0.0
      %512 = vmatpush1.msra.mxu0 0.0
      %513 = vmatprep.subr.mxu0 0.0
      %514 = vmatpush1.msra.mxu0 0.0
      %515 = vmatprep.subr.mxu0 0.0
      %516 = vmatpush1.msra.mxu0 0.0
      %517 = vmatprep.subr.mxu0 0.0
      %518 = vmatpush1.msra.mxu0 0.0
      %519 = vmatprep.subr.mxu0 0.0
      %520 = vmatpush1.msra.mxu0 0.0
      %521 = vmatprep.subr.mxu0 0.0
      %522 = vmatpush1.msra.mxu0 0.0
      %523 = vmatprep.subr.mxu0 0.0
      %524 = vmatpush1.msra.mxu0 0.0
      %525 = vmatprep.mubr.f32.mxu0 0.0
      %526 = vmatmul.mubr.f32.gmra.mrb[0].mxu0 %v301
      %v527 = vpop.f32.mrb[0].mxu0
      %v528 = vadd.f32 %v215, %v527
      %v529 = vpop.f32.mrb[0].mxu0
      %v530 = vadd.f32 %v219, %v529
      %531 = vdwg.mxu0
      %532 = vmatprep.subr.mxu0 %v317
      %533 = vmatpush1.msra.mxu0 %v315
      %534 = vmatprep.subr.mxu0 0.0
      %535 = vmatpush1.msra.mxu0 0.0
      %536 = vmatprep.subr.mxu0 0.0
      %537 = vmatpush1.msra.mxu0 0.0
      %538 = vmatprep.subr.mxu0 0.0
      %539 = vmatpush1.msra.mxu0 0.0
      %540 = vmatprep.subr.mxu0 0.0
      %541 = vmatpush1.msra.mxu0 0.0
      %542 = vmatprep.subr.mxu0 0.0
      %543 = vmatpush1.msra.mxu0 0.0
      %544 = vmatprep.subr.mxu0 0.0
      %545 = vmatpush1.msra.mxu0 0.0
      %546 = vmatprep.subr.mxu0 0.0
      %547 = vmatpush1.msra.mxu0 0.0
      %548 = vmatprep.subr.mxu0 0.0
      %549 = vmatpush1.msra.mxu0 0.0
      %550 = vmatprep.subr.mxu0 0.0
      %551 = vmatpush1.msra.mxu0 0.0
      %552 = vmatprep.subr.mxu0 0.0
      %553 = vmatpush1.msra.mxu0 0.0
      %554 = vmatprep.subr.mxu0 0.0
      %555 = vmatpush1.msra.mxu0 0.0
      %556 = vmatprep.subr.mxu0 0.0
      %557 = vmatpush1.msra.mxu0 0.0
      %558 = vmatprep.subr.mxu0 0.0
      %559 = vmatpush1.msra.mxu0 0.0
      %560 = vmatprep.subr.mxu0 0.0
      %561 = vmatpush1.msra.mxu0 0.0
      %562 = vmatprep.subr.mxu0 0.0
      %563 = vmatpush1.msra.mxu0 0.0
      %564 = vmatprep.subr.mxu0 0.0
      %565 = vmatpush1.msra.mxu0 0.0
      %566 = vmatprep.subr.mxu0 0.0
      %567 = vmatpush1.msra.mxu0 0.0
      %568 = vmatprep.subr.mxu0 0.0
      %569 = vmatpush1.msra.mxu0 0.0
      %570 = vmatprep.subr.mxu0 0.0
      %571 = vmatpush1.msra.mxu0 0.0
      %572 = vmatprep.subr.mxu0 0.0
      %573 = vmatpush1.msra.mxu0 0.0
      %574 = vmatprep.subr.mxu0 0.0
      %575 = vmatpush1.msra.mxu0 0.0
      %576 = vmatprep.subr.mxu0 0.0
      %577 = vmatpush1.msra.mxu0 0.0
      %578 = vmatprep.subr.mxu0 0.0
      %579 = vmatpush1.msra.mxu0 0.0
      %580 = vmatprep.subr.mxu0 0.0
      %581 = vmatpush1.msra.mxu0 0.0
      %582 = vmatprep.subr.mxu0 0.0
      %583 = vmatpush1.msra.mxu0 0.0
      %584 = vmatprep.subr.mxu0 0.0
      %585 = vmatpush1.msra.mxu0 0.0
      %586 = vmatprep.subr.mxu0 0.0
      %587 = vmatpush1.msra.mxu0 0.0
      %588 = vmatprep.subr.mxu0 0.0
      %589 = vmatpush1.msra.mxu0 0.0
      %590 = vmatprep.subr.mxu0 0.0
      %591 = vmatpush1.msra.mxu0 0.0
      %592 = vmatprep.subr.mxu0 0.0
      %593 = vmatpush1.msra.mxu0 0.0
      %594 = vmatprep.subr.mxu0 0.0
      %595 = vmatpush1.msra.mxu0 0.0
      %596 = vmatprep.mubr.f32.mxu0 0.0
      %597 = vmatmul.mubr.f32.gmra.mrb[0].mxu0 %v301
      %v598 = vpop.f32.mrb[0].mxu0
      %v599 = vadd.f32 %v223, %v598
      %v600 = vpop.f32.mrb[0].mxu0
      %v601 = vadd.f32 %v227, %v600
      %602 = vdwg.mxu0
      %v603 = vld [vmem:[#allocation9] sm:$0xff]
      %v604 = vld [vmem:[#allocation9 + $0x8] sm:$0xff]
      %v605 = vld [vmem:[#allocation9 + $0x10] sm:$0xff]
      %v606 = vld [vmem:[#allocation9 + $0x18] sm:$0xff]
      %v607 = vld [vmem:[#allocation9 + $0x20] sm:$0xff]
      %v608 = vld [vmem:[#allocation9 + $0x28] sm:$0xff]
      %v609 = vld [vmem:[#allocation9 + $0x30] sm:$0xff]
      %v610 = vld [vmem:[#allocation9 + $0x38] sm:$0xff]
      %v611 = vmul.f32 %v386, %v603
      %v612 = vmul.f32 %v388, %v604
      %v613 = vmul.f32 %v457, %v605
      %v614 = vmul.f32 %v459, %v606
      %v615 = vmul.f32 %v528, %v607
      %v616 = vmul.f32 %v530, %v608
      %v617 = vmul.f32 %v599, %v609
      %v618 = vmul.f32 %v601, %v610
      %v619 = vld [vmem:[#allocation11] sm:$0xff]
      %v620 = vld [vmem:[#allocation11 + $0x8] sm:$0xff]
      %v621 = vld [vmem:[#allocation11 + $0x10] sm:$0xff]
      %v622 = vld [vmem:[#allocation11 + $0x18] sm:$0xff]
      %v623 = vld [vmem:[#allocation11 + $0x20] sm:$0xff]
      %v624 = vld [vmem:[#allocation11 + $0x28] sm:$0xff]
      %v625 = vld [vmem:[#allocation11 + $0x30] sm:$0xff]
      %v626 = vld [vmem:[#allocation11 + $0x38] sm:$0xff]
      %v627 = vld [vmem:[#allocation11 + $0x40] sm:$0xff]
      %v628 = vld [vmem:[#allocation11 + $0x48] sm:$0xff]
      %v629 = vld [vmem:[#allocation11 + $0x50] sm:$0xff]
      %v630 = vld [vmem:[#allocation11 + $0x58] sm:$0xff]
      %v631 = vld [vmem:[#allocation11 + $0x60] sm:$0xff]
      %v632 = vld [vmem:[#allocation11 + $0x68] sm:$0xff]
      %v633 = vld [vmem:[#allocation11 + $0x70] sm:$0xff]
      %v634 = vld [vmem:[#allocation11 + $0x78] sm:$0xff]
      %v635 = vld [vmem:[#allocation11 + $0x80] sm:$0xff]
      %v636 = vld [vmem:[#allocation11 + $0x88] sm:$0xff]
      %v637 = vld [vmem:[#allocation11 + $0x90] sm:$0xff]
      %v638 = vld [vmem:[#allocation11 + $0x98] sm:$0xff]
      %v639 = vld [vmem:[#allocation11 + $0xa0] sm:$0xff]
      %v640 = vld [vmem:[#allocation11 + $0xa8] sm:$0xff]
      %v641 = vld [vmem:[#allocation11 + $0xb0] sm:$0xff]
      %v642 = vld [vmem:[#allocation11 + $0xb8] sm:$0xff]
      %v643 = vld [vmem:[#allocation11 + $0xc0] sm:$0xff]
      %v644 = vld [vmem:[#allocation11 + $0xc8] sm:$0xff]
      %v645 = vld [vmem:[#allocation11 + $0xd0] sm:$0xff]
      %v646 = vld [vmem:[#allocation11 + $0xd8] sm:$0xff]
      %v647 = vld [vmem:[#allocation11 + $0xe0] sm:$0xff]
      %v648 = vld [vmem:[#allocation11 + $0xe8] sm:$0xff]
      %v649 = vld [vmem:[#allocation11 + $0xf0] sm:$0xff]
      %v650 = vld [vmem:[#allocation11 + $0xf8] sm:$0xff]
      %v651 = vld [vmem:[#allocation11 + $0x100] sm:$0xff]
      %v652 = vld [vmem:[#allocation11 + $0x108] sm:$0xff]
      %v653 = vld [vmem:[#allocation11 + $0x110] sm:$0xff]
      %v654 = vld [vmem:[#allocation11 + $0x118] sm:$0xff]
      %v655 = vld [vmem:[#allocation11 + $0x120] sm:$0xff]
      %v656 = vld [vmem:[#allocation11 + $0x128] sm:$0xff]
      %v657 = vld [vmem:[#allocation11 + $0x130] sm:$0xff]
      %v658 = vld [vmem:[#allocation11 + $0x138] sm:$0xff]
      %v659 = vld [vmem:[#allocation11 + $0x140] sm:$0xff]
      %v660 = vld [vmem:[#allocation11 + $0x148] sm:$0xff]
      %v661 = vld [vmem:[#allocation11 + $0x150] sm:$0xff]
      %v662 = vld [vmem:[#allocation11 + $0x158] sm:$0xff]
      %v663 = vld [vmem:[#allocation11 + $0x160] sm:$0xff]
      %v664 = vld [vmem:[#allocation11 + $0x168] sm:$0xff]
      %v665 = vld [vmem:[#allocation11 + $0x170] sm:$0xff]
      %v666 = vld [vmem:[#allocation11 + $0x178] sm:$0xff]
      %v667 = vld [vmem:[#allocation11 + $0x180] sm:$0xff]
      %v668 = vld [vmem:[#allocation11 + $0x188] sm:$0xff]
      %v669 = vld [vmem:[#allocation11 + $0x190] sm:$0xff]
      %v670 = vld [vmem:[#allocation11 + $0x198] sm:$0xff]
      %v671 = vld [vmem:[#allocation11 + $0x1a0] sm:$0xff]
      %v672 = vld [vmem:[#allocation11 + $0x1a8] sm:$0xff]
      %v673 = vld [vmem:[#allocation11 + $0x1b0] sm:$0xff]
      %v674 = vld [vmem:[#allocation11 + $0x1b8] sm:$0xff]
      %v675 = vld [vmem:[#allocation11 + $0x1c0] sm:$0xff]
      %v676 = vld [vmem:[#allocation11 + $0x1c8] sm:$0xff]
      %v677 = vld [vmem:[#allocation11 + $0x1d0] sm:$0xff]
      %v678 = vld [vmem:[#allocation11 + $0x1d8] sm:$0xff]
      %v679 = vld [vmem:[#allocation11 + $0x1e0] sm:$0xff]
      %v680 = vld [vmem:[#allocation11 + $0x1e8] sm:$0xff]
      %v681 = vld [vmem:[#allocation11 + $0x1f0] sm:$0xff]
      %v682 = vld [vmem:[#allocation11 + $0x1f8] sm:$0xff]
      %v683 = vld [vmem:[#allocation11 + $0x200] sm:$0xff]
      %v684 = vld [vmem:[#allocation11 + $0x208] sm:$0xff]
      %v685 = vld [vmem:[#allocation11 + $0x210] sm:$0xff]
      %v686 = vld [vmem:[#allocation11 + $0x218] sm:$0xff]
      %v687 = vld [vmem:[#allocation11 + $0x220] sm:$0xff]
      %v688 = vld [vmem:[#allocation11 + $0x228] sm:$0xff]
      %v689 = vld [vmem:[#allocation11 + $0x230] sm:$0xff]
      %v690 = vld [vmem:[#allocation11 + $0x238] sm:$0xff]
      %v691 = vld [vmem:[#allocation11 + $0x240] sm:$0xff]
      %v692 = vld [vmem:[#allocation11 + $0x248] sm:$0xff]
      %v693 = vld [vmem:[#allocation11 + $0x250] sm:$0xff]
      %v694 = vld [vmem:[#allocation11 + $0x258] sm:$0xff]
      %v695 = vld [vmem:[#allocation11 + $0x260] sm:$0xff]
      %v696 = vld [vmem:[#allocation11 + $0x268] sm:$0xff]
      %v697 = vld [vmem:[#allocation11 + $0x270] sm:$0xff]
      %v698 = vld [vmem:[#allocation11 + $0x278] sm:$0xff]
      %v699 = vld [vmem:[#allocation11 + $0x280] sm:$0xff]
      %v700 = vld [vmem:[#allocation11 + $0x288] sm:$0xff]
      %v701 = vld [vmem:[#allocation11 + $0x290] sm:$0xff]
      %v702 = vld [vmem:[#allocation11 + $0x298] sm:$0xff]
      %v703 = vld [vmem:[#allocation11 + $0x2a0] sm:$0xff]
      %v704 = vld [vmem:[#allocation11 + $0x2a8] sm:$0xff]
      %v705 = vld [vmem:[#allocation11 + $0x2b0] sm:$0xff]
      %v706 = vld [vmem:[#allocation11 + $0x2b8] sm:$0xff]
      %v707 = vld [vmem:[#allocation11 + $0x2c0] sm:$0xff]
      %v708 = vld [vmem:[#allocation11 + $0x2c8] sm:$0xff]
      %v709 = vld [vmem:[#allocation11 + $0x2d0] sm:$0xff]
      %v710 = vld [vmem:[#allocation11 + $0x2d8] sm:$0xff]
      %v711 = vld [vmem:[#allocation11 + $0x2e0] sm:$0xff]
      %v712 = vld [vmem:[#allocation11 + $0x2e8] sm:$0xff]
      %v713 = vld [vmem:[#allocation11 + $0x2f0] sm:$0xff]
      %v714 = vld [vmem:[#allocation11 + $0x2f8] sm:$0xff]
      %v715 = vld [vmem:[#allocation11 + $0x300] sm:$0xff]
      %v716 = vld [vmem:[#allocation11 + $0x308] sm:$0xff]
      %v717 = vld [vmem:[#allocation11 + $0x310] sm:$0xff]
      %v718 = vld [vmem:[#allocation11 + $0x318] sm:$0xff]
      %v719 = vld [vmem:[#allocation11 + $0x320] sm:$0xff]
      %v720 = vld [vmem:[#allocation11 + $0x328] sm:$0xff]
      %v721 = vld [vmem:[#allocation11 + $0x330] sm:$0xff]
      %v722 = vld [vmem:[#allocation11 + $0x338] sm:$0xff]
      %v723 = vld [vmem:[#allocation11 + $0x340] sm:$0xff]
      %v724 = vld [vmem:[#allocation11 + $0x348] sm:$0xff]
      %v725 = vld [vmem:[#allocation11 + $0x350] sm:$0xff]
      %v726 = vld [vmem:[#allocation11 + $0x358] sm:$0xff]
      %v727 = vld [vmem:[#allocation11 + $0x360] sm:$0xff]
      %v728 = vld [vmem:[#allocation11 + $0x368] sm:$0xff]
      %v729 = vld [vmem:[#allocation11 + $0x370] sm:$0xff]
      %v730 = vld [vmem:[#allocation11 + $0x378] sm:$0xff]
      %v731 = vld [vmem:[#allocation11 + $0x380] sm:$0xff]
      %v732 = vld [vmem:[#allocation11 + $0x388] sm:$0xff]
      %v733 = vld [vmem:[#allocation11 + $0x390] sm:$0xff]
      %v734 = vld [vmem:[#allocation11 + $0x398] sm:$0xff]
      %v735 = vld [vmem:[#allocation11 + $0x3a0] sm:$0xff]
      %v736 = vld [vmem:[#allocation11 + $0x3a8] sm:$0xff]
      %v737 = vld [vmem:[#allocation11 + $0x3b0] sm:$0xff]
      %v738 = vld [vmem:[#allocation11 + $0x3b8] sm:$0xff]
      %v739 = vld [vmem:[#allocation11 + $0x3c0] sm:$0xff]
      %v740 = vld [vmem:[#allocation11 + $0x3c8] sm:$0xff]
      %v741 = vld [vmem:[#allocation11 + $0x3d0] sm:$0xff]
      %v742 = vld [vmem:[#allocation11 + $0x3d8] sm:$0xff]
      %v743 = vld [vmem:[#allocation11 + $0x3e0] sm:$0xff]
      %v744 = vld [vmem:[#allocation11 + $0x3e8] sm:$0xff]
      %v745 = vld [vmem:[#allocation11 + $0x3f0] sm:$0xff]
      %v746 = vld [vmem:[#allocation11 + $0x3f8] sm:$0xff]
      %v747 = vld [vmem:[%s5] sm:$0x1]
      %v749 = vlaneseq
      %v750 = vshrl.u32 %v749, 7
      %v751 = vsub.s32 0, %v750
      %v752 = vrot.slane %v747, %v751
      %754 = vmatprep.subr.mxu0 0.0
      %755 = vmatpush1.msra.mxu0 %v619
      %756 = vmatprep.subr.mxu0 0.0
      %757 = vmatpush1.msra.mxu0 %v620
      %758 = vmatprep.subr.mxu0 0.0
      %759 = vmatpush1.msra.mxu0 %v621
      %760 = vmatprep.subr.mxu0 0.0
      %761 = vmatpush1.msra.mxu0 %v622
      %762 = vmatprep.subr.mxu0 0.0
      %763 = vmatpush1.msra.mxu0 %v623
      %764 = vmatprep.subr.mxu0 0.0
      %765 = vmatpush1.msra.mxu0 %v624
      %766 = vmatprep.subr.mxu0 0.0
      %767 = vmatpush1.msra.mxu0 %v625
      %768 = vmatprep.subr.mxu0 0.0
      %769 = vmatpush1.msra.mxu0 %v626
      %770 = vmatprep.subr.mxu0 0.0
      %771 = vmatpush1.msra.mxu0 %v627
      %772 = vmatprep.subr.mxu0 0.0
      %773 = vmatpush1.msra.mxu0 %v628
      %774 = vmatprep.subr.mxu0 0.0
      %775 = vmatpush1.msra.mxu0 %v629
      %776 = vmatprep.subr.mxu0 0.0
      %777 = vmatpush1.msra.mxu0 %v630
      %778 = vmatprep.subr.mxu0 0.0
      %779 = vmatpush1.msra.mxu0 %v631
      %780 = vmatprep.subr.mxu0 0.0
      %781 = vmatpush1.msra.mxu0 %v632
      %782 = vmatprep.subr.mxu0 0.0
      %783 = vmatpush1.msra.mxu0 %v633
      %784 = vmatprep.subr.mxu0 0.0
      %785 = vmatpush1.msra.mxu0 %v634
      %786 = vmatprep.subr.mxu0 0.0
      %787 = vmatpush1.msra.mxu0 %v635
      %788 = vmatprep.subr.mxu0 0.0
      %789 = vmatpush1.msra.mxu0 %v636
      %790 = vmatprep.subr.mxu0 0.0
      %791 = vmatpush1.msra.mxu0 %v637
      %792 = vmatprep.subr.mxu0 0.0
      %793 = vmatpush1.msra.mxu0 %v638
      %794 = vmatprep.subr.mxu0 0.0
      %795 = vmatpush1.msra.mxu0 %v639
      %796 = vmatprep.subr.mxu0 0.0
      %797 = vmatpush1.msra.mxu0 %v640
      %798 = vmatprep.subr.mxu0 0.0
      %799 = vmatpush1.msra.mxu0 %v641
      %800 = vmatprep.subr.mxu0 0.0
      %801 = vmatpush1.msra.mxu0 %v642
      %802 = vmatprep.subr.mxu0 0.0
      %803 = vmatpush1.msra.mxu0 %v643
      %804 = vmatprep.subr.mxu0 0.0
      %805 = vmatpush1.msra.mxu0 %v644
      %806 = vmatprep.subr.mxu0 0.0
      %807 = vmatpush1.msra.mxu0 %v645
      %808 = vmatprep.subr.mxu0 0.0
      %809 = vmatpush1.msra.mxu0 %v646
      %810 = vmatprep.subr.mxu0 0.0
      %811 = vmatpush1.msra.mxu0 %v647
      %812 = vmatprep.subr.mxu0 0.0
      %813 = vmatpush1.msra.mxu0 %v648
      %814 = vmatprep.subr.mxu0 0.0
      %815 = vmatpush1.msra.mxu0 %v649
      %816 = vmatprep.subr.mxu0 0.0
      %817 = vmatpush1.msra.mxu0 %v650
      %818 = vmatprep.mubr.f32.mxu0 %v612
      %819 = vmatmul.mubr.f32.gmra.mrb[0].mxu0 %v611
      %v820 = vpop.f32.mrb[0].mxu0
      %v821 = vadd.f32 %v752, %v820
      %v822 = vpop.f32.mrb[0].mxu0
      %823 = vdwg.mxu0
      %824 = vmatprep.subr.mxu0 0.0
      %825 = vmatpush1.msra.mxu0 %v651
      %826 = vmatprep.subr.mxu0 0.0
      %827 = vmatpush1.msra.mxu0 %v652
      %828 = vmatprep.subr.mxu0 0.0
      %829 = vmatpush1.msra.mxu0 %v653
      %830 = vmatprep.subr.mxu0 0.0
      %831 = vmatpush1.msra.mxu0 %v654
      %832 = vmatprep.subr.mxu0 0.0
      %833 = vmatpush1.msra.mxu0 %v655
      %834 = vmatprep.subr.mxu0 0.0
      %835 = vmatpush1.msra.mxu0 %v656
      %836 = vmatprep.subr.mxu0 0.0
      %837 = vmatpush1.msra.mxu0 %v657
      %838 = vmatprep.subr.mxu0 0.0
      %839 = vmatpush1.msra.mxu0 %v658
      %840 = vmatprep.subr.mxu0 0.0
      %841 = vmatpush1.msra.mxu0 %v659
      %842 = vmatprep.subr.mxu0 0.0
      %843 = vmatpush1.msra.mxu0 %v660
      %844 = vmatprep.subr.mxu0 0.0
      %845 = vmatpush1.msra.mxu0 %v661
      %846 = vmatprep.subr.mxu0 0.0
      %847 = vmatpush1.msra.mxu0 %v662
      %848 = vmatprep.subr.mxu0 0.0
      %849 = vmatpush1.msra.mxu0 %v663
      %850 = vmatprep.subr.mxu0 0.0
      %851 = vmatpush1.msra.mxu0 %v664
      %852 = vmatprep.subr.mxu0 0.0
      %853 = vmatpush1.msra.mxu0 %v665
      %854 = vmatprep.subr.mxu0 0.0
      %855 = vmatpush1.msra.mxu0 %v666
      %856 = vmatprep.subr.mxu0 0.0
      %857 = vmatpush1.msra.mxu0 %v667
      %858 = vmatprep.subr.mxu0 0.0
      %859 = vmatpush1.msra.mxu0 %v668
      %860 = vmatprep.subr.mxu0 0.0
      %861 = vmatpush1.msra.mxu0 %v669
      %862 = vmatprep.subr.mxu0 0.0
      %863 = vmatpush1.msra.mxu0 %v670
      %864 = vmatprep.subr.mxu0 0.0
      %865 = vmatpush1.msra.mxu0 %v671
      %866 = vmatprep.subr.mxu0 0.0
      %867 = vmatpush1.msra.mxu0 %v672
      %868 = vmatprep.subr.mxu0 0.0
      %869 = vmatpush1.msra.mxu0 %v673
      %870 = vmatprep.subr.mxu0 0.0
      %871 = vmatpush1.msra.mxu0 %v674
      %872 = vmatprep.subr.mxu0 0.0
      %873 = vmatpush1.msra.mxu0 %v675
      %874 = vmatprep.subr.mxu0 0.0
      %875 = vmatpush1.msra.mxu0 %v676
      %876 = vmatprep.subr.mxu0 0.0
      %877 = vmatpush1.msra.mxu0 %v677
      %878 = vmatprep.subr.mxu0 0.0
      %879 = vmatpush1.msra.mxu0 %v678
      %880 = vmatprep.subr.mxu0 0.0
      %881 = vmatpush1.msra.mxu0 %v679
      %882 = vmatprep.subr.mxu0 0.0
      %883 = vmatpush1.msra.mxu0 %v680
      %884 = vmatprep.subr.mxu0 0.0
      %885 = vmatpush1.msra.mxu0 %v681
      %886 = vmatprep.subr.mxu0 0.0
      %887 = vmatpush1.msra.mxu0 %v682
      %888 = vmatprep.mubr.f32.mxu0 %v614
      %889 = vmatmul.mubr.f32.gmra.mrb[0].mxu0 %v613
      %v890 = vpop.f32.mrb[0].mxu0
      %v891 = vadd.f32 %v821, %v890
      %v892 = vpop.f32.mrb[0].mxu0
      %893 = vdwg.mxu0
      %894 = vmatprep.subr.mxu0 0.0
      %895 = vmatpush1.msra.mxu0 %v683
      %896 = vmatprep.subr.mxu0 0.0
      %897 = vmatpush1.msra.mxu0 %v684
      %898 = vmatprep.subr.mxu0 0.0
      %899 = vmatpush1.msra.mxu0 %v685
      %900 = vmatprep.subr.mxu0 0.0
      %901 = vmatpush1.msra.mxu0 %v686
      %902 = vmatprep.subr.mxu0 0.0
      %903 = vmatpush1.msra.mxu0 %v687
      %904 = vmatprep.subr.mxu0 0.0
      %905 = vmatpush1.msra.mxu0 %v688
      %906 = vmatprep.subr.mxu0 0.0
      %907 = vmatpush1.msra.mxu0 %v689
      %908 = vmatprep.subr.mxu0 0.0
      %909 = vmatpush1.msra.mxu0 %v690
      %910 = vmatprep.subr.mxu0 0.0
      %911 = vmatpush1.msra.mxu0 %v691
      %912 = vmatprep.subr.mxu0 0.0
      %913 = vmatpush1.msra.mxu0 %v692
      %914 = vmatprep.subr.mxu0 0.0
      %915 = vmatpush1.msra.mxu0 %v693
      %916 = vmatprep.subr.mxu0 0.0
      %917 = vmatpush1.msra.mxu0 %v694
      %918 = vmatprep.subr.mxu0 0.0
      %919 = vmatpush1.msra.mxu0 %v695
      %920 = vmatprep.subr.mxu0 0.0
      %921 = vmatpush1.msra.mxu0 %v696
      %922 = vmatprep.subr.mxu0 0.0
      %923 = vmatpush1.msra.mxu0 %v697
      %924 = vmatprep.subr.mxu0 0.0
      %925 = vmatpush1.msra.mxu0 %v698
      %926 = vmatprep.subr.mxu0 0.0
      %927 = vmatpush1.msra.mxu0 %v699
      %928 = vmatprep.subr.mxu0 0.0
      %929 = vmatpush1.msra.mxu0 %v700
      %930 = vmatprep.subr.mxu0 0.0
      %931 = vmatpush1.msra.mxu0 %v701
      %932 = vmatprep.subr.mxu0 0.0
      %933 = vmatpush1.msra.mxu0 %v702
      %934 = vmatprep.subr.mxu0 0.0
      %935 = vmatpush1.msra.mxu0 %v703
      %936 = vmatprep.subr.mxu0 0.0
      %937 = vmatpush1.msra.mxu0 %v704
      %938 = vmatprep.subr.mxu0 0.0
      %939 = vmatpush1.msra.mxu0 %v705
      %940 = vmatprep.subr.mxu0 0.0
      %941 = vmatpush1.msra.mxu0 %v706
      %942 = vmatprep.subr.mxu0 0.0
      %943 = vmatpush1.msra.mxu0 %v707
      %944 = vmatprep.subr.mxu0 0.0
      %945 = vmatpush1.msra.mxu0 %v708
      %946 = vmatprep.subr.mxu0 0.0
      %947 = vmatpush1.msra.mxu0 %v709
      %948 = vmatprep.subr.mxu0 0.0
      %949 = vmatpush1.msra.mxu0 %v710
      %950 = vmatprep.subr.mxu0 0.0
      %951 = vmatpush1.msra.mxu0 %v711
      %952 = vmatprep.subr.mxu0 0.0
      %953 = vmatpush1.msra.mxu0 %v712
      %954 = vmatprep.subr.mxu0 0.0
      %955 = vmatpush1.msra.mxu0 %v713
      %956 = vmatprep.subr.mxu0 0.0
      %957 = vmatpush1.msra.mxu0 %v714
      %958 = vmatprep.mubr.f32.mxu0 %v616
      %959 = vmatmul.mubr.f32.gmra.mrb[0].mxu0 %v615
      %v960 = vpop.f32.mrb[0].mxu0
      %v961 = vadd.f32 %v891, %v960
      %v962 = vpop.f32.mrb[0].mxu0
      %963 = vdwg.mxu0
      %964 = vmatprep.subr.mxu0 0.0
      %965 = vmatpush1.msra.mxu0 %v715
      %966 = vmatprep.subr.mxu0 0.0
      %967 = vmatpush1.msra.mxu0 %v716
      %968 = vmatprep.subr.mxu0 0.0
      %969 = vmatpush1.msra.mxu0 %v717
      %970 = vmatprep.subr.mxu0 0.0
      %971 = vmatpush1.msra.mxu0 %v718
      %972 = vmatprep.subr.mxu0 0.0
      %973 = vmatpush1.msra.mxu0 %v719
      %974 = vmatprep.subr.mxu0 0.0
      %975 = vmatpush1.msra.mxu0 %v720
      %976 = vmatprep.subr.mxu0 0.0
      %977 = vmatpush1.msra.mxu0 %v721
      %978 = vmatprep.subr.mxu0 0.0
      %979 = vmatpush1.msra.mxu0 %v722
      %980 = vmatprep.subr.mxu0 0.0
      %981 = vmatpush1.msra.mxu0 %v723
      %982 = vmatprep.subr.mxu0 0.0
      %983 = vmatpush1.msra.mxu0 %v724
      %984 = vmatprep.subr.mxu0 0.0
      %985 = vmatpush1.msra.mxu0 %v725
      %986 = vmatprep.subr.mxu0 0.0
      %987 = vmatpush1.msra.mxu0 %v726
      %988 = vmatprep.subr.mxu0 0.0
      %989 = vmatpush1.msra.mxu0 %v727
      %990 = vmatprep.subr.mxu0 0.0
      %991 = vmatpush1.msra.mxu0 %v728
      %992 = vmatprep.subr.mxu0 0.0
      %993 = vmatpush1.msra.mxu0 %v729
      %994 = vmatprep.subr.mxu0 0.0
      %995 = vmatpush1.msra.mxu0 %v730
      %996 = vmatprep.subr.mxu0 0.0
      %997 = vmatpush1.msra.mxu0 %v731
      %998 = vmatprep.subr.mxu0 0.0
      %999 = vmatpush1.msra.mxu0 %v732
      %1000 = vmatprep.subr.mxu0 0.0
      %1001 = vmatpush1.msra.mxu0 %v733
      %1002 = vmatprep.subr.mxu0 0.0
      %1003 = vmatpush1.msra.mxu0 %v734
      %1004 = vmatprep.subr.mxu0 0.0
      %1005 = vmatpush1.msra.mxu0 %v735
      %1006 = vmatprep.subr.mxu0 0.0
      %1007 = vmatpush1.msra.mxu0 %v736
      %1008 = vmatprep.subr.mxu0 0.0
      %1009 = vmatpush1.msra.mxu0 %v737
      %1010 = vmatprep.subr.mxu0 0.0
      %1011 = vmatpush1.msra.mxu0 %v738
      %1012 = vmatprep.subr.mxu0 0.0
      %1013 = vmatpush1.msra.mxu0 %v739
      %1014 = vmatprep.subr.mxu0 0.0
      %1015 = vmatpush1.msra.mxu0 %v740
      %1016 = vmatprep.subr.mxu0 0.0
      %1017 = vmatpush1.msra.mxu0 %v741
      %1018 = vmatprep.subr.mxu0 0.0
      %1019 = vmatpush1.msra.mxu0 %v742
      %1020 = vmatprep.subr.mxu0 0.0
      %1021 = vmatpush1.msra.mxu0 %v743
      %1022 = vmatprep.subr.mxu0 0.0
      %1023 = vmatpush1.msra.mxu0 %v744
      %1024 = vmatprep.subr.mxu0 0.0
      %1025 = vmatpush1.msra.mxu0 %v745
      %1026 = vmatprep.subr.mxu0 0.0
      %1027 = vmatpush1.msra.mxu0 %v746
      %1028 = vmatprep.mubr.f32.mxu0 %v618
      %1029 = vmatmul.mubr.f32.gmra.mrb[0].mxu0 %v617
      %v1030 = vpop.f32.mrb[0].mxu0
      %v1031 = vadd.f32 %v961, %v1030
      %v1032 = vpop.f32.mrb[0].mxu0
      %1033 = vdwg.mxu0
      %1034 = vst [vmem:[#allocation12] sm:$0xff] %v1031
    $region53: #{tpu_custom_call.1} parent=1 // pred_fallthru
      _
    // Predicated region
    $region54: #{tpu_custom_call.1} parent=1 // pred_check
      _
    $region55: #{tpu_custom_call.1} parent=1 // pred_check_branch
      %1036 = sbr.rel (0) target = $region57
    $region56: #{tpu_custom_call.1} parent=1 // pred_region
      %s1038 = ssub.s32 128, 128
      %1039 = vsyncadd [#allocation5], %s1038
      %s1041 = sshll.u32 [#allocation12], 4
      %s1042 = int_to_ptr.vmem [resolvable:$true] %s1041
      %1044 = dma.vmem_to_hbm [thread:$0]  %s1042, 128, %s6, [#allocation5]
    $region57: #{tpu_custom_call.1} parent=1 // pred_fallthru
      _
    // Predicated region
    $region58: #{tpu_custom_call.1} parent=1 // pred_check
      _
    $region59: #{tpu_custom_call.1} parent=1 // pred_check_branch
      %1046 = sbr.rel (0) target = $region61
    $region60: #{tpu_custom_call.1} parent=1 // pred_region
      %1047 = dma.done [#allocation5], 128
    $region61: #{tpu_custom_call.1} parent=1 // pred_fallthru
      _
    %1048 = vsyncpa [#allocation4], 1
    %1049 = vsyncpa [#allocation7], 1
    %1050 = vsyncpa [#allocation10], 1
    %1051 = vsyncpa [#allocation5], 1

</llo_original>
